<compile_context>
chip_gen: v6e
topology: v6e:2x2x1
jax: 0.10.0
libtpu: 0.0.40
codegen_flags: <defaults>
</compile_context>

<pallas_src>
from functools import partial

import jax
import jax.numpy as jnp
from jax import lax
from jax.experimental import pallas as pl
from jax.experimental.pallas import tpu as pltpu


def _round_up(x: int, m: int) -> int:
    return (x + m - 1) // m * m


def _soft_threshold(x, t):
    # sign(x) * relu(|x| - t)  ==  x - clip(x, -t, t)   (2 VPU ops)
    return x - jnp.clip(x, -t, t)


def ista_rnn_kernel(g_ref, btt_ref, w_ref, y_ref, z_ref, colsq_ref, *,
                    layers: int, shrink_factor: float):
    """One batch tile: z = W @ ISTA(y) plus per-column sum-of-squares partials."""
    G = g_ref[...]        # (N, N)   I - tau * B^T B    (precomputed, VMEM-resident)
    BtT = btt_ref[...]    # (N, M)   tau * B^T          (precomputed, VMEM-resident)
    W = w_ref[...]        # (N, N)
    y = y_ref[...]        # (M, TB)  lane-dense batch tile (zero-padded columns)

    # c = tau * (A W)^T y
    c = jnp.dot(BtT, y, preferred_element_type=jnp.float32)          # (N, TB)

    # f_1 = shrink(c);  f_{i+1} = shrink(G f_i + c)   (kept in f32: rounding
    # would compound over the unrolled layers).
    f = _soft_threshold(c, shrink_factor)
    for _ in range(1, layers):
        gf = jnp.dot(G, f, preferred_element_type=jnp.float32)
        f = _soft_threshold(gf + c, shrink_factor)

    # Unscaled reconstruction; the global-norm clip is a cross-tile reduction,
    # handled in a second (tiny, memory-bound) pass in the wrapper.
    z = jnp.dot(W, f, preferred_element_type=jnp.float32)            # (N, TB)
    z_ref[...] = z
    # Per-column sum of squares (sublane reduce -> XLU; padded cols stay 0).
    colsq_ref[...] = jnp.sum(z * z, axis=0, keepdims=True)           # (1, TB)


def make_ista_rnn(A, W, *, layers: int, tau: float, lamb: float, b_out: float,
                  tile_b: int = 2048):
    """Builds the forward pass.  G / BtT are computed ONCE here (parameter-update
    time) and reused by every forward call."""
    if layers <= 0:
        raise ValueError("layers must be greater than 0")

    A = jnp.asarray(A, jnp.float32)
    W = jnp.asarray(W, jnp.float32)
    M, N = A.shape

    # ---- parameter-only precompute, cached across forward calls ----
    Bm = jnp.dot(A, W)                                           # (M, N)
    BtT = (tau * Bm.T).astype(jnp.float32)                       # (N, M)
    G = (jnp.eye(N, dtype=jnp.float32)
         - tau * jnp.dot(Bm.T, Bm)).astype(jnp.float32)          # (N, N)
    G, BtT, W = jax.device_put((G, BtT, W))

    shrink_factor = float(lamb * tau)
    b_out_f = float(b_out)

    @jax.jit
    def forward(y):
        y = y.astype(jnp.float32)
        batch = y.shape[1]

        # Lane-dense batch tile (multiple of 128); pad batch up to a whole
        # number of tiles with zero columns (they stay exactly zero through
        # shrink/matmuls and contribute 0 to the norm).
        tb = min(int(tile_b), _round_up(batch, 128))
        pad_b = _round_up(batch, tb)
        num_tiles = pad_b // tb
        y_p = jnp.pad(y, ((0, 0), (0, pad_b - batch)))

        kernel = partial(ista_rnn_kernel, layers=layers,
                         shrink_factor=shrink_factor)

        flops = 2 * pad_b * (N * M + layers * N * N)
        bytes_accessed = 4 * (M * pad_b + (N + 1) * pad_b + M * N + 2 * N * N)

        z_p, colsq = pl.pallas_call(
            kernel,
            out_shape=(jax.ShapeDtypeStruct((N, pad_b), jnp.float32),
                       jax.ShapeDtypeStruct((1, pad_b), jnp.float32)),
            grid=(num_tiles,),
            in_specs=[
                pl.BlockSpec((N, N), lambda i: (0, 0)),   # G   (resident)
                pl.BlockSpec((N, M), lambda i: (0, 0)),   # BtT (resident)
                pl.BlockSpec((N, N), lambda i: (0, 0)),   # W   (resident)
                pl.BlockSpec((M, tb), lambda i: (0, i)),  # y tile
            ],
            out_specs=(
                pl.BlockSpec((N, tb), lambda i: (0, i)),  # z tile (unscaled)
                pl.BlockSpec((1, tb), lambda i: (0, i)),  # per-column sumsq
            ),
            compiler_params=pltpu.CompilerParams(
                dimension_semantics=("parallel",)),
            cost_estimate=pl.CostEstimate(flops=int(flops),
                                          transcendentals=0,
                                          bytes_accessed=int(bytes_accessed)),
        )(G, BtT, W, y_p)

        # ---- pass 2: global Frobenius-norm clip (cross-tile reduction) ----
        sumsq = jnp.sum(colsq)
        # b_out * rsqrt(sumsq) >= 1  <=>  norm <= b_out  -> min picks 1.
        # sumsq == 0 -> rsqrt = inf -> min picks 1 -> output stays 0. No NaNs.
        scale = jnp.minimum(jnp.float32(1.0), b_out_f * lax.rsqrt(sumsq))
        return z_p[:, :batch] * scale

    return forward


def ista_rnn_reference(A, W, y, *, layers, tau, lamb, b_out):
    """Pure-JAX reference mirroring the PyTorch forward()."""
    sf = lamb * tau

    def shrink_relu(x):
        return jnp.sign(x) * jnp.maximum(jnp.abs(x) - sf, 0.0)

    B = A @ W
    c = tau * B.T @ y
    G = jnp.eye(W.shape[0], dtype=jnp.float32) - tau * (W.T @ A.T @ A @ W)
    f = shrink_relu(c)
    for _ in range(1, layers):
        f = shrink_relu(G @ f + c)
    z = W @ f
    norm = jnp.linalg.norm(z)
    return jnp.where(norm > b_out, b_out * z / norm, z)


if __name__ == "__main__":
    # Small, deterministic problem consistent with the module:
    #   M = 32 measurements, N = 64 signal dim, layers = 4
    M, N = 32, 64
    LAYERS = 4
    TAU = 0.5
    LAMB = 0.1
    B_OUT = 10.0

    key = jax.random.PRNGKey(0)
    k_a, k_w, k_y1, k_y2 = jax.random.split(key, 4)

    # measurement matrix (scaled so tau * ||A||_2^2 stays modest)
    A = (jax.random.normal(k_a, (M, N), dtype=jnp.float32) / jnp.sqrt(M)).astype(jnp.float32)
    # orthogonal dictionary weight (stand-in for torch's orthogonal parametrization)
    # TODO(synk): torch's `orthogonal` parametrization itself has no Pallas
    # equivalent; an orthogonal W is constructed here via QR instead.
    W, _ = jnp.linalg.qr(jax.random.normal(k_w, (N, N), dtype=jnp.float32))
    W = W.astype(jnp.float32)

    # Small tile so the multi-tile grid + two-pass norm clip are exercised too.
    forward = make_ista_rnn(A, W, layers=LAYERS, tau=TAU, lamb=LAMB,
                            b_out=B_OUT, tile_b=128)

    ok = True
    for batch, k in ((8, k_y1), (272, k_y2)):      # 1 tile  /  3 tiles (padded)
        y = jax.random.normal(k, (M, batch), dtype=jnp.float32)
        out = jax.block_until_ready(forward(y))
        ref = ista_rnn_reference(A, W, y, layers=LAYERS, tau=TAU,
                                 lamb=LAMB, b_out=B_OUT)
        ok &= out.shape == (N, batch)
        ok &= bool(jnp.all(jnp.isfinite(out)))
        ok &= bool(jnp.allclose(out, ref, atol=1e-4, rtol=1e-4))

    assert ok
    print("KERNEL_OK")
</pallas_src>

<mosaic_0001>
module attributes {stable_mosaic.version = 11 : i64} {
  func.func @ista_rnn_kernel(%arg0: i32, %arg1: memref<64x64xf32, #tpu.memory_space<vmem>>, %arg2: memref<64x32xf32, #tpu.memory_space<vmem>>, %arg3: memref<64x64xf32, #tpu.memory_space<vmem>>, %arg4: memref<32x128xf32, #tpu.memory_space<vmem>>, %arg5: memref<64x128xf32, #tpu.memory_space<vmem>>, %arg6: memref<1x128xf32, #tpu.memory_space<vmem>>) attributes {dimension_semantics = [#tpu.dimension_semantics<parallel>], iteration_bounds = array<i64: 1>, scalar_prefetch = 0 : i64, scratch_operands = 0 : i64, tpu.core_type = #tpu.core_type<tc>, window_params = [{pipeline_mode = #tpu.pipeline_mode<synchronous>, transform_indices = @transform_0, window_bounds = array<i64: 64, 64>}, {pipeline_mode = #tpu.pipeline_mode<synchronous>, transform_indices = @transform_1, window_bounds = array<i64: 64, 32>}, {pipeline_mode = #tpu.pipeline_mode<synchronous>, transform_indices = @transform_2, window_bounds = array<i64: 64, 64>}, {transform_indices = @transform_3, window_bounds = array<i64: 32, 128>}, {transform_indices = @transform_4, window_bounds = array<i64: 64, 128>}, {transform_indices = @transform_5, window_bounds = array<i64: 1, 128>}]} {
    %c0 = arith.constant 0 : index
    %c0_0 = arith.constant 0 : index
    %0 = vector.load %arg1[%c0, %c0_0] : memref<64x64xf32, #tpu.memory_space<vmem>>, vector<64x64xf32>
    %c0_1 = arith.constant 0 : index
    %c0_2 = arith.constant 0 : index
    %1 = vector.load %arg2[%c0_1, %c0_2] : memref<64x32xf32, #tpu.memory_space<vmem>>, vector<64x32xf32>
    %c0_3 = arith.constant 0 : index
    %c0_4 = arith.constant 0 : index
    %2 = vector.load %arg3[%c0_3, %c0_4] : memref<64x64xf32, #tpu.memory_space<vmem>>, vector<64x64xf32>
    %c0_5 = arith.constant 0 : index
    %c0_6 = arith.constant 0 : index
    %3 = vector.load %arg4[%c0_5, %c0_6] : memref<32x128xf32, #tpu.memory_space<vmem>>, vector<32x128xf32>
    %cst = arith.constant dense<0.000000e+00> : vector<64x128xf32>
    %4 = tpu.matmul %1, %3, %cst {dimension_numbers = #tpu.dot_dimension_numbers<[1], [0], [0], [1], [0, 0, 1, 1], [], []>} : vector<64x32xf32>, vector<32x128xf32>, vector<64x128xf32> -> vector<64x128xf32>
    %cst_7 = arith.constant -5.000000e-02 : f32
    %cst_8 = arith.constant 5.000000e-02 : f32
    %5 = vector.broadcast %cst_7 : f32 to vector<64x128xf32>
    %6 = arith.maximumf %5, %4 : vector<64x128xf32>
    %7 = vector.broadcast %cst_8 : f32 to vector<64x128xf32>
    %8 = arith.minimumf %7, %6 : vector<64x128xf32>
    %9 = arith.subf %4, %8 : vector<64x128xf32>
    %cst_9 = arith.constant dense<0.000000e+00> : vector<64x128xf32>
    %10 = tpu.matmul %0, %9, %cst_9 {dimension_numbers = #tpu.dot_dimension_numbers<[1], [0], [0], [1], [0, 0, 1, 1], [], []>} : vector<64x64xf32>, vector<64x128xf32>, vector<64x128xf32> -> vector<64x128xf32>
    %11 = arith.addf %10, %4 : vector<64x128xf32>
    %cst_10 = arith.constant -5.000000e-02 : f32
    %cst_11 = arith.constant 5.000000e-02 : f32
    %12 = vector.broadcast %cst_10 : f32 to vector<64x128xf32>
    %13 = arith.maximumf %12, %11 : vector<64x128xf32>
    %14 = vector.broadcast %cst_11 : f32 to vector<64x128xf32>
    %15 = arith.minimumf %14, %13 : vector<64x128xf32>
    %16 = arith.subf %11, %15 : vector<64x128xf32>
    %cst_12 = arith.constant dense<0.000000e+00> : vector<64x128xf32>
    %17 = tpu.matmul %0, %16, %cst_12 {dimension_numbers = #tpu.dot_dimension_numbers<[1], [0], [0], [1], [0, 0, 1, 1], [], []>} : vector<64x64xf32>, vector<64x128xf32>, vector<64x128xf32> -> vector<64x128xf32>
    %18 = arith.addf %17, %4 : vector<64x128xf32>
    %cst_13 = arith.constant -5.000000e-02 : f32
    %cst_14 = arith.constant 5.000000e-02 : f32
    %19 = vector.broadcast %cst_13 : f32 to vector<64x128xf32>
    %20 = arith.maximumf %19, %18 : vector<64x128xf32>
    %21 = vector.broadcast %cst_14 : f32 to vector<64x128xf32>
    %22 = arith.minimumf %21, %20 : vector<64x128xf32>
    %23 = arith.subf %18, %22 : vector<64x128xf32>
    %cst_15 = arith.constant dense<0.000000e+00> : vector<64x128xf32>
    %24 = tpu.matmul %0, %23, %cst_15 {dimension_numbers = #tpu.dot_dimension_numbers<[1], [0], [0], [1], [0, 0, 1, 1], [], []>} : vector<64x64xf32>, vector<64x128xf32>, vector<64x128xf32> -> vector<64x128xf32>
    %25 = arith.addf %24, %4 : vector<64x128xf32>
    %cst_16 = arith.constant -5.000000e-02 : f32
    %cst_17 = arith.constant 5.000000e-02 : f32
    %26 = vector.broadcast %cst_16 : f32 to vector<64x128xf32>
    %27 = arith.maximumf %26, %25 : vector<64x128xf32>
    %28 = vector.broadcast %cst_17 : f32 to vector<64x128xf32>
    %29 = arith.minimumf %28, %27 : vector<64x128xf32>
    %30 = arith.subf %25, %29 : vector<64x128xf32>
    %cst_18 = arith.constant dense<0.000000e+00> : vector<64x128xf32>
    %31 = tpu.matmul %2, %30, %cst_18 {dimension_numbers = #tpu.dot_dimension_numbers<[1], [0], [0], [1], [0, 0, 1, 1], [], []>} : vector<64x64xf32>, vector<64x128xf32>, vector<64x128xf32> -> vector<64x128xf32>
    %c0_19 = arith.constant 0 : index
    %c0_20 = arith.constant 0 : index
    %32 = vector.load %arg5[%c0_19, %c0_20] : memref<64x128xf32, #tpu.memory_space<vmem>>, vector<64x128xf32>
    tpu.vector_store %arg5[%c0_19, %c0_20], %31 {strides = array<i32>} : memref<64x128xf32, #tpu.memory_space<vmem>>, vector<64x128xf32>,
    %33 = arith.mulf %31, %31 : vector<64x128xf32>
    %cst_21 = arith.constant dense<0.000000e+00> : vector<128xf32>
    %34 = vector.multi_reduction <add>, %33, %cst_21 [0] : vector<64x128xf32> to vector<128xf32>
    %35 = vector.shape_cast %34 : vector<128xf32> to vector<1x128xf32>
    %c0_22 = arith.constant 0 : index
    %c0_23 = arith.constant 0 : index
    %36 = vector.load %arg6[%c0_22, %c0_23] : memref<1x128xf32, #tpu.memory_space<vmem>>, vector<1x128xf32>
    tpu.vector_store %arg6[%c0_22, %c0_23], %35 {strides = array<i32>} : memref<1x128xf32, #tpu.memory_space<vmem>>, vector<1x128xf32>,
    return
  }
  func.func @transform_0(%arg0: i32) -> (i32, i32) {
    %c0_i32 = arith.constant 0 : i32
    %c0_i32_0 = arith.constant 0 : i32
    %c0_i32_1 = arith.constant 0 : i32
    return %c0_i32, %c0_i32_0 : i32, i32
  }
  func.func @transform_1(%arg0: i32) -> (i32, i32) {
    %c0_i32 = arith.constant 0 : i32
    %c0_i32_0 = arith.constant 0 : i32
    %c0_i32_1 = arith.constant 0 : i32
    return %c0_i32, %c0_i32_0 : i32, i32
  }
  func.func @transform_2(%arg0: i32) -> (i32, i32) {
    %c0_i32 = arith.constant 0 : i32
    %c0_i32_0 = arith.constant 0 : i32
    %c0_i32_1 = arith.constant 0 : i32
    return %c0_i32, %c0_i32_0 : i32, i32
  }
  func.func @transform_3(%arg0: i32) -> (i32, i32) {
    %c0_i32 = arith.constant 0 : i32
    %c0_i32_0 = arith.constant 0 : i32
    return %c0_i32, %arg0 : i32, i32
  }
  func.func @transform_4(%arg0: i32) -> (i32, i32) {
    %c0_i32 = arith.constant 0 : i32
    %c0_i32_0 = arith.constant 0 : i32
    return %c0_i32, %arg0 : i32, i32
  }
  func.func @transform_5(%arg0: i32) -> (i32, i32) {
    %c0_i32 = arith.constant 0 : i32
    %c0_i32_0 = arith.constant 0 : i32
    return %c0_i32, %arg0 : i32, i32
  }
}

</mosaic_0001>

<llo_original>
// kernel: forward.1
$region0: #{forward.1}
  #allocation0 [shape = 'u32[]', space=smem, size = 0x4, offset = 0x4, fixed_abs, tag = 'smem constant byte address 0x4 - core index']
  #allocation1 [shape = 'u32[144,128]{1,0:T(1,128)}', space=vmem, size = 0x12000, scoped, tag = 'internal scratch']
  %s0 = inlined_call_operand.hbm [shape: f32[64,64], index: 0, kind: input, shape index: {}]
  %s1 = inlined_call_operand.hbm [shape: f32[64,32], index: 1, kind: input, shape index: {}]
  %s2 = inlined_call_operand.vmem [shape: f32[64,64], index: 2, kind: input, shape index: {}]
  %s3 = inlined_call_operand.vmem [shape: f32[32,128], index: 3, kind: input, shape index: {}]
  %s4 = inlined_call_operand.vmem [shape: f32[64,128], index: 4, kind: output, shape index: {0}]
  %s5 = inlined_call_operand.vmem [shape: f32[1,128], index: 5, kind: output, shape index: {1}]
  %6 = xla_tuple %s4, %s5
  %s7 = sld [smem:[#allocation0]]
  $region42: #{forward.1} parent=0
    _
  %s9 = ssub.s32 1, %s7
  %s10 = scalar_select 0, %s9, %s7
  $region1: #{forward.1} parent=0
    #allocation2 [shape = 'u8[32768]{0}', space=vmem, size = 0x8000, scoped, tag = 'input window, operand 0, single buffered']
    #allocation3 [shape = 's32[1]{0}', space=sflag, size = 0x4, scoped, tag = 'scoped memory for forward.1']
    #allocation4 [shape = 'u8[32768]{0}', space=vmem, size = 0x8000, scoped, tag = 'input window, operand 1, single buffered']
    #allocation5 [shape = 's32[1]{0}', space=sflag, size = 0x4, scoped, tag = 'scoped memory for forward.1']
    %11 = vsyncpa [#allocation3], 0
    %12 = vsyncpa [#allocation5], 0
    // Predicated region
    $region2: #{forward.1} parent=1 // pred_check
      _
    $region3: #{forward.1} parent=1 // pred_check_branch
      %14 = sbr.rel (0) target = $region5
    $region4: #{forward.1} parent=1 // pred_region
      %s16 = ssub.s32 1024, 1024
      %17 = vsyncadd [#allocation3], %s16
      %s18 = sshll.u32 [#allocation2], 4
      %s19 = int_to_ptr.vmem [resolvable:$true] %s18
      %24 = dma.hbm_to_vmem [thread:$0]  %s0, 1024, %s19, [#allocation3], 128, 128, 8
    $region5: #{forward.1} parent=1 // pred_fallthru
      _
    // Predicated region
    $region6: #{forward.1} parent=1 // pred_check
      _
    $region7: #{forward.1} parent=1 // pred_check_branch
      %26 = sbr.rel (0) target = $region9
    $region8: #{forward.1} parent=1 // pred_region
      %s28 = ssub.s32 1024, 1024
      %29 = vsyncadd [#allocation5], %s28
      %s30 = sshll.u32 [#allocation4], 4
      %s31 = int_to_ptr.vmem [resolvable:$true] %s30
      %36 = dma.hbm_to_vmem [thread:$0]  %s1, 1024, %s31, [#allocation5], 128, 128, 8
    $region9: #{forward.1} parent=1 // pred_fallthru
      _
    // Predicated region
    $region10: #{forward.1} parent=1 // pred_check
      _
    $region11: #{forward.1} parent=1 // pred_check_branch
      %38 = sbr.rel (0) target = $region13
    $region12: #{forward.1} parent=1 // pred_region
      _
    $region13: #{forward.1} parent=1 // pred_fallthru
      _
    // Predicated region
    $region14: #{forward.1} parent=1 // pred_check
      _
    $region15: #{forward.1} parent=1 // pred_check_branch
      %40 = sbr.rel (0) target = $region17
    $region16: #{forward.1} parent=1 // pred_region
      _
    $region17: #{forward.1} parent=1 // pred_fallthru
      _
    // Predicated region
    $region18: #{forward.1} parent=1 // pred_check
      _
    $region19: #{forward.1} parent=1 // pred_check_branch
      %42 = sbr.rel (0) target = $region21
    $region20: #{forward.1} parent=1 // pred_region
      %43 = dma.done [#allocation3], 1024
    $region21: #{forward.1} parent=1 // pred_fallthru
      _
    // Predicated region
    $region22: #{forward.1} parent=1 // pred_check
      _
    $region23: #{forward.1} parent=1 // pred_check_branch
      %45 = sbr.rel (0) target = $region25
    $region24: #{forward.1} parent=1 // pred_region
      %46 = dma.done [#allocation5], 1024
    $region25: #{forward.1} parent=1 // pred_fallthru
      _
    %v47 = vld [vmem:[#allocation2] sm:$0xff]
    %v48 = vld [vmem:[#allocation2 + $0x8] sm:$0xff]
    %v49 = vld [vmem:[#allocation2 + $0x10] sm:$0xff]
    %v50 = vld [vmem:[#allocation2 + $0x18] sm:$0xff]
    %v51 = vld [vmem:[#allocation2 + $0x20] sm:$0xff]
    %v52 = vld [vmem:[#allocation2 + $0x28] sm:$0xff]
    %v53 = vld [vmem:[#allocation2 + $0x30] sm:$0xff]
    %v54 = vld [vmem:[#allocation2 + $0x38] sm:$0xff]
    %v55 = vld [vmem:[#allocation4] sm:$0xff]
    %v56 = vld [vmem:[#allocation4 + $0x8] sm:$0xff]
    %v57 = vld [vmem:[#allocation4 + $0x10] sm:$0xff]
    %v58 = vld [vmem:[#allocation4 + $0x18] sm:$0xff]
    %v59 = vld [vmem:[#allocation4 + $0x20] sm:$0xff]
    %v60 = vld [vmem:[#allocation4 + $0x28] sm:$0xff]
    %v61 = vld [vmem:[#allocation4 + $0x30] sm:$0xff]
    %v62 = vld [vmem:[#allocation4 + $0x38] sm:$0xff]
    %v63 = vld [vmem:[%s2] sm:$0xff]
    %v64 = vld [vmem:[%s2 + $0x8] sm:$0xff]
    %v65 = vld [vmem:[%s2 + $0x10] sm:$0xff]
    %v66 = vld [vmem:[%s2 + $0x18] sm:$0xff]
    %v67 = vld [vmem:[%s2 + $0x20] sm:$0xff]
    %v68 = vld [vmem:[%s2 + $0x28] sm:$0xff]
    %v69 = vld [vmem:[%s2 + $0x30] sm:$0xff]
    %v70 = vld [vmem:[%s2 + $0x38] sm:$0xff]
    %v71 = vld [vmem:[%s3] sm:$0xff]
    %v72 = vld [vmem:[%s3 + $0x8] sm:$0xff]
    %v73 = vld [vmem:[%s3 + $0x10] sm:$0xff]
    %v74 = vld [vmem:[%s3 + $0x18] sm:$0xff]
    %vm75 = vcmask 261120
    %v77 = vsel %vm75, %v55, 0
    %v80 = vsel %vm75, %v56, 0
    %v83 = vsel %vm75, %v57, 0
    %v86 = vsel %vm75, %v58, 0
    %v89 = vsel %vm75, %v59, 0
    %v92 = vsel %vm75, %v60, 0
    %v95 = vsel %vm75, %v61, 0
    %v98 = vsel %vm75, %v62, 0
    %100 = vmatprep.subr.mxu0 0.0
    %101 = vmatpush1.msra.mxu0 0.0
    %102 = vmatprep.subr.mxu0 0.0
    %103 = vmatpush1.msra.mxu0 0.0
    %104 = vmatprep.subr.mxu0 0.0
    %105 = vmatpush1.msra.mxu0 0.0
    %106 = vmatprep.subr.mxu0 0.0
    %107 = vmatpush1.msra.mxu0 0.0
    %108 = vmatprep.subr.mxu0 0.0
    %109 = vmatpush1.msra.mxu0 0.0
    %110 = vmatprep.subr.mxu0 0.0
    %111 = vmatpush1.msra.mxu0 0.0
    %112 = vmatprep.subr.mxu0 0.0
    %113 = vmatpush1.msra.mxu0 0.0
    %114 = vmatprep.subr.mxu0 0.0
    %115 = vmatpush1.msra.mxu0 0.0
    %116 = vmatprep.subr.mxu0 0.0
    %117 = vmatpush1.msra.mxu0 0.0
    %118 = vmatprep.subr.mxu0 0.0
    %119 = vmatpush1.msra.mxu0 0.0
    %120 = vmatprep.subr.mxu0 0.0
    %121 = vmatpush1.msra.mxu0 0.0
    %122 = vmatprep.subr.mxu0 0.0
    %123 = vmatpush1.msra.mxu0 0.0
    %124 = vmatprep.subr.mxu0 0.0
    %125 = vmatpush1.msra.mxu0 %v74
    %126 = vmatprep.subr.mxu0 0.0
    %127 = vmatpush1.msra.mxu0 %v73
    %128 = vmatprep.subr.mxu0 0.0
    %129 = vmatpush1.msra.mxu0 %v72
    %130 = vmatprep.subr.mxu0 0.0
    %131 = vmatpush1.msra.mxu0 %v71
    %132 = vmatprep.subr.mxu0 0.0
    %133 = vmatpush2.msra.mxu0 0.0
    %134 = vmatprep.subr.mxu0 0.0
    %135 = vmatpush2.msra.mxu0 0.0
    %136 = vmatprep.subr.mxu0 0.0
    %137 = vmatpush2.msra.mxu0 0.0
    %138 = vmatprep.subr.mxu0 0.0
    %139 = vmatpush2.msra.mxu0 0.0
    %140 = vmatprep.subr.mxu0 0.0
    %141 = vmatpush2.msra.mxu0 0.0
    %142 = vmatprep.subr.mxu0 0.0
    %143 = vmatpush2.msra.mxu0 0.0
    %144 = vmatprep.subr.mxu0 0.0
    %145 = vmatpush2.msra.mxu0 0.0
    %146 = vmatprep.subr.mxu0 0.0
    %147 = vmatpush2.msra.mxu0 0.0
    %148 = vmatprep.subr.mxu0 0.0
    %149 = vmatpush2.msra.mxu0 0.0
    %150 = vmatprep.subr.mxu0 0.0
    %151 = vmatpush2.msra.mxu0 0.0
    %152 = vmatprep.subr.mxu0 0.0
    %153 = vmatpush2.msra.mxu0 0.0
    %154 = vmatprep.subr.mxu0 0.0
    %155 = vmatpush2.msra.mxu0 0.0
    %156 = vmatprep.subr.mxu0 0.0
    %157 = vmatpush2.msra.mxu0 0.0
    %158 = vmatprep.subr.mxu0 0.0
    %159 = vmatpush2.msra.mxu0 0.0
    %160 = vmatprep.subr.mxu0 0.0
    %161 = vmatpush2.msra.mxu0 0.0
    %162 = vmatprep.subr.mxu0 0.0
    %163 = vmatpush2.msra.mxu0 0.0
    %164 = vmatprep.mubr.f32.mxu0 0.0
    %165 = vmatmul.mubr.f32.gmra.mxu0 %v77
    %v166 = vpop.f32.mrf.mxu0
    %v167 = vadd.f32 0.0, %v166
    %v168 = vpop.f32.mrf.mxu0
    %169 = vmatprep.mubr.f32.mxu0 0.0
    %170 = vmatmul.mubr.f32.gmra.mxu0 %v80
    %v171 = vpop.f32.mrf.mxu0
    %v172 = vadd.f32 0.0, %v171
    %v173 = vpop.f32.mrf.mxu0
    %174 = vmatprep.mubr.f32.mxu0 0.0
    %175 = vmatmul.mubr.f32.gmra.mxu0 %v83
    %v176 = vpop.f32.mrf.mxu0
    %v177 = vadd.f32 0.0, %v176
    %v178 = vpop.f32.mrf.mxu0
    %179 = vmatprep.mubr.f32.mxu0 0.0
    %180 = vmatmul.mubr.f32.gmra.mxu0 %v86
    %v181 = vpop.f32.mrf.mxu0
    %v182 = vadd.f32 0.0, %v181
    %v183 = vpop.f32.mrf.mxu0
    %184 = vmatprep.mubr.f32.mxu0 0.0
    %185 = vmatmul.mubr.f32.gmra.mxu0 %v89
    %v186 = vpop.f32.mrf.mxu0
    %v187 = vadd.f32 0.0, %v186
    %v188 = vpop.f32.mrf.mxu0
    %189 = vmatprep.mubr.f32.mxu0 0.0
    %190 = vmatmul.mubr.f32.gmra.mxu0 %v92
    %v191 = vpop.f32.mrf.mxu0
    %v192 = vadd.f32 0.0, %v191
    %v193 = vpop.f32.mrf.mxu0
    %194 = vmatprep.mubr.f32.mxu0 0.0
    %195 = vmatmul.mubr.f32.gmra.mxu0 %v95
    %v196 = vpop.f32.mrf.mxu0
    %v197 = vadd.f32 0.0, %v196
    %v198 = vpop.f32.mrf.mxu0
    %199 = vmatprep.mubr.f32.mxu0 0.0
    %200 = vmatmul.mubr.f32.gmra.mxu0 %v98
    %v201 = vpop.f32.mrf.mxu0
    %v202 = vadd.f32 0.0, %v201
    %v203 = vpop.f32.mrf.mxu0
    %204 = vdwg.mxu0
    %v205 = vmax.f32 %v167, -0.05
    %v206 = vmax.f32 %v172, -0.05
    %v207 = vmax.f32 %v177, -0.05
    %v208 = vmax.f32 %v182, -0.05
    %v209 = vmax.f32 %v187, -0.05
    %v210 = vmax.f32 %v192, -0.05
    %v211 = vmax.f32 %v197, -0.05
    %v212 = vmax.f32 %v202, -0.05
    %v213 = vmin.f32 %v205, 0.05
    %v214 = vmin.f32 %v206, 0.05
    %v215 = vmin.f32 %v207, 0.05
    %v216 = vmin.f32 %v208, 0.05
    %v217 = vmin.f32 %v209, 0.05
    %v218 = vmin.f32 %v210, 0.05
    %v219 = vmin.f32 %v211, 0.05
    %v220 = vmin.f32 %v212, 0.05
    %v221 = vsub.f32 %v167, %v213
    %v222 = vsub.f32 %v172, %v214
    %v223 = vsub.f32 %v177, %v215
    %v224 = vsub.f32 %v182, %v216
    %v225 = vsub.f32 %v187, %v217
    %v226 = vsub.f32 %v192, %v218
    %v227 = vsub.f32 %v197, %v219
    %v228 = vsub.f32 %v202, %v220
    %vm229 = vcmask 523264
    %v231 = vsel %vm229, %v47, 0
    %v234 = vsel %vm229, %v48, 0
    %v237 = vsel %vm229, %v49, 0
    %v240 = vsel %vm229, %v50, 0
    %v243 = vsel %vm229, %v51, 0
    %v246 = vsel %vm229, %v52, 0
    %v249 = vsel %vm229, %v53, 0
    %v252 = vsel %vm229, %v54, 0
    %254 = vmatprep.subr.mxu0 0.0
    %255 = vmatpush1.msra.mxu0 0.0
    %256 = vmatprep.subr.mxu0 0.0
    %257 = vmatpush1.msra.mxu0 0.0
    %258 = vmatprep.subr.mxu0 0.0
    %259 = vmatpush1.msra.mxu0 0.0
    %260 = vmatprep.subr.mxu0 0.0
    %261 = vmatpush1.msra.mxu0 0.0
    %262 = vmatprep.subr.mxu0 0.0
    %263 = vmatpush1.msra.mxu0 0.0
    %264 = vmatprep.subr.mxu0 0.0
    %265 = vmatpush1.msra.mxu0 0.0
    %266 = vmatprep.subr.mxu0 0.0
    %267 = vmatpush1.msra.mxu0 0.0
    %268 = vmatprep.subr.mxu0 0.0
    %269 = vmatpush1.msra.mxu0 0.0
    %270 = vmatprep.subr.mxu0 0.0
    %271 = vmatpush1.msra.mxu0 %v228
    %272 = vmatprep.subr.mxu0 0.0
    %273 = vmatpush1.msra.mxu0 %v227
    %274 = vmatprep.subr.mxu0 0.0
    %275 = vmatpush1.msra.mxu0 %v226
    %276 = vmatprep.subr.mxu0 0.0
    %277 = vmatpush1.msra.mxu0 %v225
    %278 = vmatprep.subr.mxu0 0.0
    %279 = vmatpush1.msra.mxu0 %v224
    %280 = vmatprep.subr.mxu0 0.0
    %281 = vmatpush1.msra.mxu0 %v223
    %282 = vmatprep.subr.mxu0 0.0
    %283 = vmatpush1.msra.mxu0 %v222
    %284 = vmatprep.subr.mxu0 0.0
    %285 = vmatpush1.msra.mxu0 %v221
    %286 = vmatprep.subr.mxu0 0.0
    %287 = vmatpush2.msra.mxu0 0.0
    %288 = vmatprep.subr.mxu0 0.0
    %289 = vmatpush2.msra.mxu0 0.0
    %290 = vmatprep.subr.mxu0 0.0
    %291 = vmatpush2.msra.mxu0 0.0
    %292 = vmatprep.subr.mxu0 0.0
    %293 = vmatpush2.msra.mxu0 0.0
    %294 = vmatprep.subr.mxu0 0.0
    %295 = vmatpush2.msra.mxu0 0.0
    %296 = vmatprep.subr.mxu0 0.0
    %297 = vmatpush2.msra.mxu0 0.0
    %298 = vmatprep.subr.mxu0 0.0
    %299 = vmatpush2.msra.mxu0 0.0
    %300 = vmatprep.subr.mxu0 0.0
    %301 = vmatpush2.msra.mxu0 0.0
    %302 = vmatprep.subr.mxu0 0.0
    %303 = vmatpush2.msra.mxu0 0.0
    %304 = vmatprep.subr.mxu0 0.0
    %305 = vmatpush2.msra.mxu0 0.0
    %306 = vmatprep.subr.mxu0 0.0
    %307 = vmatpush2.msra.mxu0 0.0
    %308 = vmatprep.subr.mxu0 0.0
    %309 = vmatpush2.msra.mxu0 0.0
    %310 = vmatprep.subr.mxu0 0.0
    %311 = vmatpush2.msra.mxu0 0.0
    %312 = vmatprep.subr.mxu0 0.0
    %313 = vmatpush2.msra.mxu0 0.0
    %314 = vmatprep.subr.mxu0 0.0
    %315 = vmatpush2.msra.mxu0 0.0
    %316 = vmatprep.subr.mxu0 0.0
    %317 = vmatpush2.msra.mxu0 0.0
    %318 = vmatprep.mubr.f32.mxu0 0.0
    %319 = vmatmul.mubr.f32.gmra.mxu0 %v231
    %v320 = vpop.f32.mrf.mxu0
    %v321 = vadd.f32 %v167, %v320
    %v322 = vpop.f32.mrf.mxu0
    %323 = vmatprep.mubr.f32.mxu0 0.0
    %324 = vmatmul.mubr.f32.gmra.mxu0 %v234
    %v325 = vpop.f32.mrf.mxu0
    %v326 = vadd.f32 %v172, %v325
    %v327 = vpop.f32.mrf.mxu0
    %328 = vmatprep.mubr.f32.mxu0 0.0
    %329 = vmatmul.mubr.f32.gmra.mxu0 %v237
    %v330 = vpop.f32.mrf.mxu0
    %v331 = vadd.f32 %v177, %v330
    %v332 = vpop.f32.mrf.mxu0
    %333 = vmatprep.mubr.f32.mxu0 0.0
    %334 = vmatmul.mubr.f32.gmra.mxu0 %v240
    %v335 = vpop.f32.mrf.mxu0
    %v336 = vadd.f32 %v182, %v335
    %v337 = vpop.f32.mrf.mxu0
    %338 = vmatprep.mubr.f32.mxu0 0.0
    %339 = vmatmul.mubr.f32.gmra.mxu0 %v243
    %v340 = vpop.f32.mrf.mxu0
    %v341 = vadd.f32 %v187, %v340
    %v342 = vpop.f32.mrf.mxu0
    %343 = vmatprep.mubr.f32.mxu0 0.0
    %344 = vmatmul.mubr.f32.gmra.mxu0 %v246
    %v345 = vpop.f32.mrf.mxu0
    %v346 = vadd.f32 %v192, %v345
    %v347 = vpop.f32.mrf.mxu0
    %348 = vmatprep.mubr.f32.mxu0 0.0
    %349 = vmatmul.mubr.f32.gmra.mxu0 %v249
    %v350 = vpop.f32.mrf.mxu0
    %v351 = vadd.f32 %v197, %v350
    %v352 = vpop.f32.mrf.mxu0
    %353 = vmatprep.mubr.f32.mxu0 0.0
    %354 = vmatmul.mubr.f32.gmra.mxu0 %v252
    %v355 = vpop.f32.mrf.mxu0
    %v356 = vadd.f32 %v202, %v355
    %v357 = vpop.f32.mrf.mxu0
    %358 = vdwg.mxu0
    %v359 = vmax.f32 %v321, -0.05
    %v360 = vmax.f32 %v326, -0.05
    %v361 = vmax.f32 %v331, -0.05
    %v362 = vmax.f32 %v336, -0.05
    %v363 = vmax.f32 %v341, -0.05
    %v364 = vmax.f32 %v346, -0.05
    %v365 = vmax.f32 %v351, -0.05
    %v366 = vmax.f32 %v356, -0.05
    %v367 = vmin.f32 %v359, 0.05
    %v368 = vmin.f32 %v360, 0.05
    %v369 = vmin.f32 %v361, 0.05
    %v370 = vmin.f32 %v362, 0.05
    %v371 = vmin.f32 %v363, 0.05
    %v372 = vmin.f32 %v364, 0.05
    %v373 = vmin.f32 %v365, 0.05
    %v374 = vmin.f32 %v366, 0.05
    %v375 = vsub.f32 %v321, %v367
    %v376 = vsub.f32 %v326, %v368
    %v377 = vsub.f32 %v331, %v369
    %v378 = vsub.f32 %v336, %v370
    %v379 = vsub.f32 %v341, %v371
    %v380 = vsub.f32 %v346, %v372
    %v381 = vsub.f32 %v351, %v373
    %v382 = vsub.f32 %v356, %v374
    %383 = vmatprep.subr.mxu0 0.0
    %384 = vmatpush1.msra.mxu0 0.0
    %385 = vmatprep.subr.mxu0 0.0
    %386 = vmatpush1.msra.mxu0 0.0
    %387 = vmatprep.subr.mxu0 0.0
    %388 = vmatpush1.msra.mxu0 0.0
    %389 = vmatprep.subr.mxu0 0.0
    %390 = vmatpush1.msra.mxu0 0.0
    %391 = vmatprep.subr.mxu0 0.0
    %392 = vmatpush1.msra.mxu0 0.0
    %393 = vmatprep.subr.mxu0 0.0
    %394 = vmatpush1.msra.mxu0 0.0
    %395 = vmatprep.subr.mxu0 0.0
    %396 = vmatpush1.msra.mxu0 0.0
    %397 = vmatprep.subr.mxu0 0.0
    %398 = vmatpush1.msra.mxu0 0.0
    %399 = vmatprep.subr.mxu0 0.0
    %400 = vmatpush1.msra.mxu0 %v382
    %401 = vmatprep.subr.mxu0 0.0
    %402 = vmatpush1.msra.mxu0 %v381
    %403 = vmatprep.subr.mxu0 0.0
    %404 = vmatpush1.msra.mxu0 %v380
    %405 = vmatprep.subr.mxu0 0.0
    %406 = vmatpush1.msra.mxu0 %v379
    %407 = vmatprep.subr.mxu0 0.0
    %408 = vmatpush1.msra.mxu0 %v378
    %409 = vmatprep.subr.mxu0 0.0
    %410 = vmatpush1.msra.mxu0 %v377
    %411 = vmatprep.subr.mxu0 0.0
    %412 = vmatpush1.msra.mxu0 %v376
    %413 = vmatprep.subr.mxu0 0.0
    %414 = vmatpush1.msra.mxu0 %v375
    %415 = vmatprep.subr.mxu0 0.0
    %416 = vmatpush2.msra.mxu0 0.0
    %417 = vmatprep.subr.mxu0 0.0
    %418 = vmatpush2.msra.mxu0 0.0
    %419 = vmatprep.subr.mxu0 0.0
    %420 = vmatpush2.msra.mxu0 0.0
    %421 = vmatprep.subr.mxu0 0.0
    %422 = vmatpush2.msra.mxu0 0.0
    %423 = vmatprep.subr.mxu0 0.0
    %424 = vmatpush2.msra.mxu0 0.0
    %425 = vmatprep.subr.mxu0 0.0
    %426 = vmatpush2.msra.mxu0 0.0
    %427 = vmatprep.subr.mxu0 0.0
    %428 = vmatpush2.msra.mxu0 0.0
    %429 = vmatprep.subr.mxu0 0.0
    %430 = vmatpush2.msra.mxu0 0.0
    %431 = vmatprep.subr.mxu0 0.0
    %432 = vmatpush2.msra.mxu0 0.0
    %433 = vmatprep.subr.mxu0 0.0
    %434 = vmatpush2.msra.mxu0 0.0
    %435 = vmatprep.subr.mxu0 0.0
    %436 = vmatpush2.msra.mxu0 0.0
    %437 = vmatprep.subr.mxu0 0.0
    %438 = vmatpush2.msra.mxu0 0.0
    %439 = vmatprep.subr.mxu0 0.0
    %440 = vmatpush2.msra.mxu0 0.0
    %441 = vmatprep.subr.mxu0 0.0
    %442 = vmatpush2.msra.mxu0 0.0
    %443 = vmatprep.subr.mxu0 0.0
    %444 = vmatpush2.msra.mxu0 0.0
    %445 = vmatprep.subr.mxu0 0.0
    %446 = vmatpush2.msra.mxu0 0.0
    %447 = vmatprep.mubr.f32.mxu0 0.0
    %448 = vmatmul.mubr.f32.gmra.mxu0 %v231
    %v449 = vpop.f32.mrf.mxu0
    %v450 = vadd.f32 %v167, %v449
    %v451 = vpop.f32.mrf.mxu0
    %452 = vmatprep.mubr.f32.mxu0 0.0
    %453 = vmatmul.mubr.f32.gmra.mxu0 %v234
    %v454 = vpop.f32.mrf.mxu0
    %v455 = vadd.f32 %v172, %v454
    %v456 = vpop.f32.mrf.mxu0
    %457 = vmatprep.mubr.f32.mxu0 0.0
    %458 = vmatmul.mubr.f32.gmra.mxu0 %v237
    %v459 = vpop.f32.mrf.mxu0
    %v460 = vadd.f32 %v177, %v459
    %v461 = vpop.f32.mrf.mxu0
    %462 = vmatprep.mubr.f32.mxu0 0.0
    %463 = vmatmul.mubr.f32.gmra.mxu0 %v240
    %v464 = vpop.f32.mrf.mxu0
    %v465 = vadd.f32 %v182, %v464
    %v466 = vpop.f32.mrf.mxu0
    %467 = vmatprep.mubr.f32.mxu0 0.0
    %468 = vmatmul.mubr.f32.gmra.mxu0 %v243
    %v469 = vpop.f32.mrf.mxu0
    %v470 = vadd.f32 %v187, %v469
    %v471 = vpop.f32.mrf.mxu0
    %472 = vmatprep.mubr.f32.mxu0 0.0
    %473 = vmatmul.mubr.f32.gmra.mxu0 %v246
    %v474 = vpop.f32.mrf.mxu0
    %v475 = vadd.f32 %v192, %v474
    %v476 = vpop.f32.mrf.mxu0
    %477 = vmatprep.mubr.f32.mxu0 0.0
    %478 = vmatmul.mubr.f32.gmra.mxu0 %v249
    %v479 = vpop.f32.mrf.mxu0
    %v480 = vadd.f32 %v197, %v479
    %v481 = vpop.f32.mrf.mxu0
    %482 = vmatprep.mubr.f32.mxu0 0.0
    %483 = vmatmul.mubr.f32.gmra.mxu0 %v252
    %v484 = vpop.f32.mrf.mxu0
    %v485 = vadd.f32 %v202, %v484
    %v486 = vpop.f32.mrf.mxu0
    %487 = vdwg.mxu0
    %v488 = vmax.f32 %v450, -0.05
    %v489 = vmax.f32 %v455, -0.05
    %v490 = vmax.f32 %v460, -0.05
    %v491 = vmax.f32 %v465, -0.05
    %v492 = vmax.f32 %v470, -0.05
    %v493 = vmax.f32 %v475, -0.05
    %v494 = vmax.f32 %v480, -0.05
    %v495 = vmax.f32 %v485, -0.05
    %v496 = vmin.f32 %v488, 0.05
    %v497 = vmin.f32 %v489, 0.05
    %v498 = vmin.f32 %v490, 0.05
    %v499 = vmin.f32 %v491, 0.05
    %v500 = vmin.f32 %v492, 0.05
    %v501 = vmin.f32 %v493, 0.05
    %v502 = vmin.f32 %v494, 0.05
    %v503 = vmin.f32 %v495, 0.05
    %v504 = vsub.f32 %v450, %v496
    %v505 = vsub.f32 %v455, %v497
    %v506 = vsub.f32 %v460, %v498
    %v507 = vsub.f32 %v465, %v499
    %v508 = vsub.f32 %v470, %v500
    %v509 = vsub.f32 %v475, %v501
    %v510 = vsub.f32 %v480, %v502
    %v511 = vsub.f32 %v485, %v503
    %512 = vmatprep.subr.mxu0 0.0
    %513 = vmatpush1.msra.mxu0 0.0
    %514 = vmatprep.subr.mxu0 0.0
    %515 = vmatpush1.msra.mxu0 0.0
    %516 = vmatprep.subr.mxu0 0.0
    %517 = vmatpush1.msra.mxu0 0.0
    %518 = vmatprep.subr.mxu0 0.0
    %519 = vmatpush1.msra.mxu0 0.0
    %520 = vmatprep.subr.mxu0 0.0
    %521 = vmatpush1.msra.mxu0 0.0
    %522 = vmatprep.subr.mxu0 0.0
    %523 = vmatpush1.msra.mxu0 0.0
    %524 = vmatprep.subr.mxu0 0.0
    %525 = vmatpush1.msra.mxu0 0.0
    %526 = vmatprep.subr.mxu0 0.0
    %527 = vmatpush1.msra.mxu0 0.0
    %528 = vmatprep.subr.mxu0 0.0
    %529 = vmatpush1.msra.mxu0 %v511
    %530 = vmatprep.subr.mxu0 0.0
    %531 = vmatpush1.msra.mxu0 %v510
    %532 = vmatprep.subr.mxu0 0.0
    %533 = vmatpush1.msra.mxu0 %v509
    %534 = vmatprep.subr.mxu0 0.0
    %535 = vmatpush1.msra.mxu0 %v508
    %536 = vmatprep.subr.mxu0 0.0
    %537 = vmatpush1.msra.mxu0 %v507
    %538 = vmatprep.subr.mxu0 0.0
    %539 = vmatpush1.msra.mxu0 %v506
    %540 = vmatprep.subr.mxu0 0.0
    %541 = vmatpush1.msra.mxu0 %v505
    %542 = vmatprep.subr.mxu0 0.0
    %543 = vmatpush1.msra.mxu0 %v504
    %544 = vmatprep.subr.mxu0 0.0
    %545 = vmatpush2.msra.mxu0 0.0
    %546 = vmatprep.subr.mxu0 0.0
    %547 = vmatpush2.msra.mxu0 0.0
    %548 = vmatprep.subr.mxu0 0.0
    %549 = vmatpush2.msra.mxu0 0.0
    %550 = vmatprep.subr.mxu0 0.0
    %551 = vmatpush2.msra.mxu0 0.0
    %552 = vmatprep.subr.mxu0 0.0
    %553 = vmatpush2.msra.mxu0 0.0
    %554 = vmatprep.subr.mxu0 0.0
    %555 = vmatpush2.msra.mxu0 0.0
    %556 = vmatprep.subr.mxu0 0.0
    %557 = vmatpush2.msra.mxu0 0.0
    %558 = vmatprep.subr.mxu0 0.0
    %559 = vmatpush2.msra.mxu0 0.0
    %560 = vmatprep.subr.mxu0 0.0
    %561 = vmatpush2.msra.mxu0 0.0
    %562 = vmatprep.subr.mxu0 0.0
    %563 = vmatpush2.msra.mxu0 0.0
    %564 = vmatprep.subr.mxu0 0.0
    %565 = vmatpush2.msra.mxu0 0.0
    %566 = vmatprep.subr.mxu0 0.0
    %567 = vmatpush2.msra.mxu0 0.0
    %568 = vmatprep.subr.mxu0 0.0
    %569 = vmatpush2.msra.mxu0 0.0
    %570 = vmatprep.subr.mxu0 0.0
    %571 = vmatpush2.msra.mxu0 0.0
    %572 = vmatprep.subr.mxu0 0.0
    %573 = vmatpush2.msra.mxu0 0.0
    %574 = vmatprep.subr.mxu0 0.0
    %575 = vmatpush2.msra.mxu0 0.0
    %576 = vmatprep.mubr.f32.mxu0 0.0
    %577 = vmatmul.mubr.f32.gmra.mxu0 %v231
    %v578 = vpop.f32.mrf.mxu0
    %v579 = vadd.f32 %v167, %v578
    %v580 = vpop.f32.mrf.mxu0
    %581 = vmatprep.mubr.f32.mxu0 0.0
    %582 = vmatmul.mubr.f32.gmra.mxu0 %v234
    %v583 = vpop.f32.mrf.mxu0
    %v584 = vadd.f32 %v172, %v583
    %v585 = vpop.f32.mrf.mxu0
    %586 = vmatprep.mubr.f32.mxu0 0.0
    %587 = vmatmul.mubr.f32.gmra.mxu0 %v237
    %v588 = vpop.f32.mrf.mxu0
    %v589 = vadd.f32 %v177, %v588
    %v590 = vpop.f32.mrf.mxu0
    %591 = vmatprep.mubr.f32.mxu0 0.0
    %592 = vmatmul.mubr.f32.gmra.mxu0 %v240
    %v593 = vpop.f32.mrf.mxu0
    %v594 = vadd.f32 %v182, %v593
    %v595 = vpop.f32.mrf.mxu0
    %596 = vmatprep.mubr.f32.mxu0 0.0
    %597 = vmatmul.mubr.f32.gmra.mxu0 %v243
    %v598 = vpop.f32.mrf.mxu0
    %v599 = vadd.f32 %v187, %v598
    %v600 = vpop.f32.mrf.mxu0
    %601 = vmatprep.mubr.f32.mxu0 0.0
    %602 = vmatmul.mubr.f32.gmra.mxu0 %v246
    %v603 = vpop.f32.mrf.mxu0
    %v604 = vadd.f32 %v192, %v603
    %v605 = vpop.f32.mrf.mxu0
    %606 = vmatprep.mubr.f32.mxu0 0.0
    %607 = vmatmul.mubr.f32.gmra.mxu0 %v249
    %v608 = vpop.f32.mrf.mxu0
    %v609 = vadd.f32 %v197, %v608
    %v610 = vpop.f32.mrf.mxu0
    %611 = vmatprep.mubr.f32.mxu0 0.0
    %612 = vmatmul.mubr.f32.gmra.mxu0 %v252
    %v613 = vpop.f32.mrf.mxu0
    %v614 = vadd.f32 %v202, %v613
    %v615 = vpop.f32.mrf.mxu0
    %616 = vdwg.mxu0
    %v617 = vmax.f32 %v579, -0.05
    %v618 = vmax.f32 %v584, -0.05
    %v619 = vmax.f32 %v589, -0.05
    %v620 = vmax.f32 %v594, -0.05
    %v621 = vmax.f32 %v599, -0.05
    %v622 = vmax.f32 %v604, -0.05
    %v623 = vmax.f32 %v609, -0.05
    %v624 = vmax.f32 %v614, -0.05
    %v625 = vmin.f32 %v617, 0.05
    %v626 = vmin.f32 %v618, 0.05
    %v627 = vmin.f32 %v619, 0.05
    %v628 = vmin.f32 %v620, 0.05
    %v629 = vmin.f32 %v621, 0.05
    %v630 = vmin.f32 %v622, 0.05
    %v631 = vmin.f32 %v623, 0.05
    %v632 = vmin.f32 %v624, 0.05
    %v633 = vsub.f32 %v579, %v625
    %v634 = vsub.f32 %v584, %v626
    %v635 = vsub.f32 %v589, %v627
    %v636 = vsub.f32 %v594, %v628
    %v637 = vsub.f32 %v599, %v629
    %v638 = vsub.f32 %v604, %v630
    %v639 = vsub.f32 %v609, %v631
    %v640 = vsub.f32 %v614, %v632
    %v642 = vsel %vm229, %v63, 0
    %v645 = vsel %vm229, %v64, 0
    %v648 = vsel %vm229, %v65, 0
    %v651 = vsel %vm229, %v66, 0
    %v654 = vsel %vm229, %v67, 0
    %v657 = vsel %vm229, %v68, 0
    %v660 = vsel %vm229, %v69, 0
    %v663 = vsel %vm229, %v70, 0
    %665 = vmatprep.subr.mxu0 0.0
    %666 = vmatpush1.msra.mxu0 0.0
    %667 = vmatprep.subr.mxu0 0.0
    %668 = vmatpush1.msra.mxu0 0.0
    %669 = vmatprep.subr.mxu0 0.0
    %670 = vmatpush1.msra.mxu0 0.0
    %671 = vmatprep.subr.mxu0 0.0
    %672 = vmatpush1.msra.mxu0 0.0
    %673 = vmatprep.subr.mxu0 0.0
    %674 = vmatpush1.msra.mxu0 0.0
    %675 = vmatprep.subr.mxu0 0.0
    %676 = vmatpush1.msra.mxu0 0.0
    %677 = vmatprep.subr.mxu0 0.0
    %678 = vmatpush1.msra.mxu0 0.0
    %679 = vmatprep.subr.mxu0 0.0
    %680 = vmatpush1.msra.mxu0 0.0
    %681 = vmatprep.subr.mxu0 0.0
    %682 = vmatpush1.msra.mxu0 %v640
    %683 = vmatprep.subr.mxu0 0.0
    %684 = vmatpush1.msra.mxu0 %v639
    %685 = vmatprep.subr.mxu0 0.0
    %686 = vmatpush1.msra.mxu0 %v638
    %687 = vmatprep.subr.mxu0 0.0
    %688 = vmatpush1.msra.mxu0 %v637
    %689 = vmatprep.subr.mxu0 0.0
    %690 = vmatpush1.msra.mxu0 %v636
    %691 = vmatprep.subr.mxu0 0.0
    %692 = vmatpush1.msra.mxu0 %v635
    %693 = vmatprep.subr.mxu0 0.0
    %694 = vmatpush1.msra.mxu0 %v634
    %695 = vmatprep.subr.mxu0 0.0
    %696 = vmatpush1.msra.mxu0 %v633
    %697 = vmatprep.subr.mxu0 0.0
    %698 = vmatpush2.msra.mxu0 0.0
    %699 = vmatprep.subr.mxu0 0.0
    %700 = vmatpush2.msra.mxu0 0.0
    %701 = vmatprep.subr.mxu0 0.0
    %702 = vmatpush2.msra.mxu0 0.0
    %703 = vmatprep.subr.mxu0 0.0
    %704 = vmatpush2.msra.mxu0 0.0
    %705 = vmatprep.subr.mxu0 0.0
    %706 = vmatpush2.msra.mxu0 0.0
    %707 = vmatprep.subr.mxu0 0.0
    %708 = vmatpush2.msra.mxu0 0.0
    %709 = vmatprep.subr.mxu0 0.0
    %710 = vmatpush2.msra.mxu0 0.0
    %711 = vmatprep.subr.mxu0 0.0
    %712 = vmatpush2.msra.mxu0 0.0
    %713 = vmatprep.subr.mxu0 0.0
    %714 = vmatpush2.msra.mxu0 0.0
    %715 = vmatprep.subr.mxu0 0.0
    %716 = vmatpush2.msra.mxu0 0.0
    %717 = vmatprep.subr.mxu0 0.0
    %718 = vmatpush2.msra.mxu0 0.0
    %719 = vmatprep.subr.mxu0 0.0
    %720 = vmatpush2.msra.mxu0 0.0
    %721 = vmatprep.subr.mxu0 0.0
    %722 = vmatpush2.msra.mxu0 0.0
    %723 = vmatprep.subr.mxu0 0.0
    %724 = vmatpush2.msra.mxu0 0.0
    %725 = vmatprep.subr.mxu0 0.0
    %726 = vmatpush2.msra.mxu0 0.0
    %727 = vmatprep.subr.mxu0 0.0
    %728 = vmatpush2.msra.mxu0 0.0
    %729 = vmatprep.mubr.f32.mxu0 0.0
    %730 = vmatmul.mubr.f32.gmra.mxu0 %v642
    %v731 = vpop.f32.mrf.mxu0
    %v732 = vadd.f32 0.0, %v731
    %v733 = vpop.f32.mrf.mxu0
    %734 = vmatprep.mubr.f32.mxu0 0.0
    %735 = vmatmul.mubr.f32.gmra.mxu0 %v645
    %v736 = vpop.f32.mrf.mxu0
    %v737 = vadd.f32 0.0, %v736
    %v738 = vpop.f32.mrf.mxu0
    %739 = vmatprep.mubr.f32.mxu0 0.0
    %740 = vmatmul.mubr.f32.gmra.mxu0 %v648
    %v741 = vpop.f32.mrf.mxu0
    %v742 = vadd.f32 0.0, %v741
    %v743 = vpop.f32.mrf.mxu0
    %744 = vmatprep.mubr.f32.mxu0 0.0
    %745 = vmatmul.mubr.f32.gmra.mxu0 %v651
    %v746 = vpop.f32.mrf.mxu0
    %v747 = vadd.f32 0.0, %v746
    %v748 = vpop.f32.mrf.mxu0
    %749 = vmatprep.mubr.f32.mxu0 0.0
    %750 = vmatmul.mubr.f32.gmra.mxu0 %v654
    %v751 = vpop.f32.mrf.mxu0
    %v752 = vadd.f32 0.0, %v751
    %v753 = vpop.f32.mrf.mxu0
    %754 = vmatprep.mubr.f32.mxu0 0.0
    %755 = vmatmul.mubr.f32.gmra.mxu0 %v657
    %v756 = vpop.f32.mrf.mxu0
    %v757 = vadd.f32 0.0, %v756
    %v758 = vpop.f32.mrf.mxu0
    %759 = vmatprep.mubr.f32.mxu0 0.0
    %760 = vmatmul.mubr.f32.gmra.mxu0 %v660
    %v761 = vpop.f32.mrf.mxu0
    %v762 = vadd.f32 0.0, %v761
    %v763 = vpop.f32.mrf.mxu0
    %764 = vmatprep.mubr.f32.mxu0 0.0
    %765 = vmatmul.mubr.f32.gmra.mxu0 %v663
    %v766 = vpop.f32.mrf.mxu0
    %v767 = vadd.f32 0.0, %v766
    %v768 = vpop.f32.mrf.mxu0
    %769 = vdwg.mxu0
    %770 = vst [vmem:[%s4] sm:$0xff] %v732
    %771 = vst [vmem:[%s4 + $0x8] sm:$0xff] %v737
    %772 = vst [vmem:[%s4 + $0x10] sm:$0xff] %v742
    %773 = vst [vmem:[%s4 + $0x18] sm:$0xff] %v747
    %774 = vst [vmem:[%s4 + $0x20] sm:$0xff] %v752
    %775 = vst [vmem:[%s4 + $0x28] sm:$0xff] %v757
    %776 = vst [vmem:[%s4 + $0x30] sm:$0xff] %v762
    %777 = vst [vmem:[%s4 + $0x38] sm:$0xff] %v767
    %v778 = vmul.f32 %v732, %v732
    %v779 = vmul.f32 %v737, %v737
    %v780 = vmul.f32 %v742, %v742
    %v781 = vmul.f32 %v747, %v747
    %v782 = vmul.f32 %v752, %v752
    %v783 = vmul.f32 %v757, %v757
    %v784 = vmul.f32 %v762, %v762
    %v785 = vmul.f32 %v767, %v767
    %v786 = vadd.f32 %v778, %v779
    %v787 = vadd.f32 %v786, %v780
    %v788 = vadd.f32 %v787, %v781
    %v789 = vadd.f32 %v788, %v782
    %v790 = vadd.f32 %v789, %v783
    %v791 = vadd.f32 %v790, %v784
    %v792 = vadd.f32 %v791, %v785
    %v793 = vrot.slane %v792, 4
    %v794 = vadd.f32 %v792, %v793
    %v795 = vrot.slane %v794, 2
    %v796 = vadd.f32 %v794, %v795
    %v797 = vrot.slane %v796, 1
    %v798 = vadd.f32 %v796, %v797
    %799 = vst [vmem:[%s5] sm:$0x1] %v798
    // Predicated region
    $region26: #{forward.1} parent=1 // pred_check
      _
    $region27: #{forward.1} parent=1 // pred_check_branch
      %801 = sbr.rel (0) target = $region29
    $region28: #{forward.1} parent=1 // pred_region
      _
    $region29: #{forward.1} parent=1 // pred_fallthru
      _
    // Predicated region
    $region30: #{forward.1} parent=1 // pred_check
      _
    $region31: #{forward.1} parent=1 // pred_check_branch
      %803 = sbr.rel (0) target = $region33
    $region32: #{forward.1} parent=1 // pred_region
      _
    $region33: #{forward.1} parent=1 // pred_fallthru
      _
    // Predicated region
    $region34: #{forward.1} parent=1 // pred_check
      _
    $region35: #{forward.1} parent=1 // pred_check_branch
      %805 = sbr.rel (0) target = $region37
    $region36: #{forward.1} parent=1 // pred_region
      _
    $region37: #{forward.1} parent=1 // pred_fallthru
      _
    // Predicated region
    $region38: #{forward.1} parent=1 // pred_check
      _
    $region39: #{forward.1} parent=1 // pred_check_branch
      %807 = sbr.rel (0) target = $region41
    $region40: #{forward.1} parent=1 // pred_region
      _
    $region41: #{forward.1} parent=1 // pred_fallthru
      _
    %808 = vsyncpa [#allocation3], 1
    %809 = vsyncpa [#allocation5], 1

</llo_original>
